<compile_context>
chip_gen: v5e
topology: v5e:2x2
jax: 0.10.0
libtpu: 0.0.40
codegen_flags: <defaults>
</compile_context>

<pallas_src>
import functools

import jax
import jax.numpy as jnp
from jax.experimental import pallas as pl
from jax.experimental.pallas import tpu as pltpu


# ---------------------------------------------------------------------------
# helpers
# ---------------------------------------------------------------------------
def _round_up(v, m):
    return ((v + m - 1) // m) * m


def _vmem_capacity_bytes():
    """Physical VMEM per TensorCore; conservative 64 MiB (v7x) if unknown."""
    try:
        info = pltpu.get_tpu_info()
        for name in ("vmem_capacity_bytes", "vmem_size_bytes", "vmem_bytes"):
            v = getattr(info, name, None)
            if v:
                return int(v)
    except Exception:
        pass
    return 64 * 1024 * 1024


def _vmem_budgets():
    cap = _vmem_capacity_bytes()
    # Scoped limit: ~100 MiB on 128 MiB parts (v5e/v6e), ~48 MiB on 64 MiB v7x.
    vmem_limit = int(max(32 << 20, min(cap - (16 << 20), 100 << 20)))
    # Budget for the double-buffered blocks + in-kernel temporaries.
    block_budget = int(min(vmem_limit * 0.6, 64 << 20))
    return vmem_limit, block_budget


# ---------------------------------------------------------------------------
# single-pass kernel: full T per block, tiled over N
# ---------------------------------------------------------------------------
def _adain_kernel(x_ref, wb_ref, o_ref, *, eps, inv_t):
    # x_ref: (T, tile_n) block.  wb_ref: (grid_n, 8, tile_n) f32, resident for
    # the whole grid (row 0 = weight, row 1 = bias, rows 2..7 = padding).
    i = pl.program_id(0)
    wb = wb_ref[i]                                   # (8, tile_n)
    w = wb[0:1, :]
    b = wb[1:2, :]

    xf = x_ref[...].astype(jnp.float32)
    # Shifted one-pass statistics (shift = first row) to avoid catastrophic
    # cancellation of E[x^2]-E[x]^2 when |mean| >> std.
    x0 = xf[0:1, :]
    d = xf - x0
    s = jnp.sum(d, axis=0, keepdims=True)            # (1, tile_n)
    ss = jnp.sum(d * d, axis=0, keepdims=True)       # (1, tile_n)
    dmean = s * inv_t
    var = jnp.maximum(ss * inv_t - dmean * dmean, 0.0)   # biased, clamped
    inv = jax.lax.rsqrt(var + eps)                        # EUP rsqrt

    # Single FMA per element: o = (x - mean)*inv*w + b = d*scale + shift.
    scale = inv * w
    shift = b - dmean * scale
    o_ref[...] = (d * scale + shift).astype(o_ref.dtype)


# ---------------------------------------------------------------------------
# two-pass kernels (large-T escape hatch): stats pass + normalize pass
# ---------------------------------------------------------------------------
def _stats_kernel(x_ref, st_ref, *, tile_t, t_total, mask_tail):
    # st_ref: (2, tile_n) accumulator, resident across the T ("arbitrary") axis.
    j = pl.program_id(1)

    @pl.when(j == 0)
    def _():
        st_ref[...] = jnp.zeros_like(st_ref)

    x = x_ref[...].astype(jnp.float32)
    if mask_tail:
        rows = jax.lax.broadcasted_iota(jnp.int32, x.shape, 0)
        x = jnp.where(rows < (t_total - j * tile_t), x, 0.0)
    st_ref[0:1, :] = st_ref[0:1, :] + jnp.sum(x, axis=0, keepdims=True)
    st_ref[1:2, :] = st_ref[1:2, :] + jnp.sum(x * x, axis=0, keepdims=True)


def _norm_kernel(x_ref, st_ref, wb_ref, o_ref, *, eps, inv_t):
    st = st_ref[...]
    mean = st[0:1, :] * inv_t
    var = jnp.maximum(st[1:2, :] * inv_t - mean * mean, 0.0)
    inv = jax.lax.rsqrt(var + eps)
    w = wb_ref[0:1, :]
    b = wb_ref[1:2, :]
    scale = inv * w
    shift = b - mean * scale
    o_ref[...] = (x_ref[...].astype(jnp.float32) * scale + shift).astype(o_ref.dtype)


def _adain_two_pass(x2d, weight, bias, eps, tile_t, tile_n,
                    vmem_limit, block_budget):
    T, N = x2d.shape
    itemsize = x2d.dtype.itemsize

    if tile_n is None:
        tile_n = N if N <= 512 else 512
    tile_n = min(tile_n, N)
    if tile_n != N:
        tile_n = max(128, (tile_n // 128) * 128)

    if tile_t is None:
        per_row = tile_n * (4 * itemsize + 8)   # dbl-buffered in/out + f32 temps
        tile_t = min(T, max(8, (block_budget // per_row) // 8 * 8))
    tile_t = min(tile_t, T)
    if tile_t != T:
        tile_t = max(8, (tile_t // 8) * 8)

    grid_n = -(-N // tile_n)
    grid_t = -(-T // tile_t)

    wb = jnp.stack([weight, bias], axis=0)           # (2, N) f32

    # Pass 1: per-column sum / sum-of-squares, T axis reduced ("arbitrary").
    stats = pl.pallas_call(
        functools.partial(_stats_kernel, tile_t=tile_t, t_total=T,
                          mask_tail=(T % tile_t) != 0),
        out_shape=jax.ShapeDtypeStruct((2, N), jnp.float32),
        grid=(grid_n, grid_t),
        in_specs=[pl.BlockSpec((tile_t, tile_n), lambda i, j: (j, i))],
        out_specs=pl.BlockSpec((2, tile_n), lambda i, j: (0, i)),
        compiler_params=pltpu.CompilerParams(
            dimension_semantics=("parallel", "arbitrary"),
            vmem_limit_bytes=vmem_limit),
    )(x2d)

    # Pass 2: normalize + affine with wide lane tiles (fully parallel grid).
    out2d = pl.pallas_call(
        functools.partial(_norm_kernel, eps=float(eps), inv_t=1.0 / T),
        out_shape=jax.ShapeDtypeStruct((T, N), x2d.dtype),
        grid=(grid_n, grid_t),
        in_specs=[pl.BlockSpec((tile_t, tile_n), lambda i, j: (j, i)),
                  pl.BlockSpec((2, tile_n), lambda i, j: (0, i)),
                  pl.BlockSpec((2, tile_n), lambda i, j: (0, i))],
        out_specs=pl.BlockSpec((tile_t, tile_n), lambda i, j: (j, i)),
        compiler_params=pltpu.CompilerParams(
            dimension_semantics=("parallel", "parallel"),
            vmem_limit_bytes=vmem_limit),
    )(x2d, stats, wb)
    return out2d


# ---------------------------------------------------------------------------
# public wrapper
# ---------------------------------------------------------------------------
def adaptive_instance_norm_1d(x, weight, bias, eps=1e-5,
                              direct_weighting=False, no_std=False,
                              tile_n=None, tile_t=None, force_two_pass=False):
    """x: (T, B, C); weight, bias: (B*C,). Returns (T, B, C)."""
    T, B, C = x.shape
    N = B * C

    weight = weight.astype(jnp.float32).reshape(N)
    bias = bias.astype(jnp.float32).reshape(N)

    if direct_weighting:
        # Degenerate path in the reference (requires T == 1): pure elementwise.
        # TODO(synk): kept in plain JAX; no reduction hot path to put in Pallas.
        assert T == 1, "direct_weighting path requires T == 1 (as in the PyTorch view)"
        x_flat = jnp.transpose(x, (1, 2, 0)).reshape(N)
        out = x_flat + bias if no_std else x_flat * weight + bias
        return jnp.transpose(out.reshape(B, C, T), (2, 0, 1)).astype(x.dtype)

    # (T, B, C) -> (T, N): free contiguous reshape; column n = b*C + c matches
    # the PyTorch (B*C,) weight/bias indexing.
    x2d = x.reshape(T, N)
    itemsize = x.dtype.itemsize

    vmem_limit, block_budget = _vmem_budgets()

    # Per-column VMEM footprint of the single-pass kernel:
    #   2x double-buffered input + output blocks (native dtype) + ~2 f32 temps.
    bytes_per_col = 4 * T * itemsize + 2 * T * 4 + 32
    max_cols = block_budget // bytes_per_col

    # Large-T escape hatch: if even a 128-lane (or full-N for tiny N) column
    # block of the whole T doesn't fit, use the two-pass structure.
    if force_two_pass or max_cols < min(N, 128):
        out2d = _adain_two_pass(x2d, weight, bias, eps, tile_t, tile_n,
                                vmem_limit, block_budget)
        return out2d.reshape(T, B, C)

    # ---- single-pass tile selection ----
    if tile_n is None:
        if N <= 128:
            tile_n = N                     # can't split below one lane tile
        else:
            # >= 8 grid steps (pipelining + both v7x TCs), but never below 128
            # lanes and never above what the VMEM budget allows.
            min_steps = 8
            cap_steps = _round_up(max(1, -(-N // min_steps)), 128)
            cap_vmem = max(128, (max_cols // 128) * 128)
            tile_n = max(128, min(cap_steps, cap_vmem))
    tile_n = min(tile_n, N)
    grid_n = -(-N // tile_n)

    # Pack weight/bias as a small resident side input: (grid_n, 8, tile_n) f32
    # (rows 0/1 = weight/bias, rest zero padding for 8-sublane alignment).
    padded_n = grid_n * tile_n
    wb = jnp.stack([weight, bias], axis=0)                 # (2, N)
    if padded_n != N:
        wb = jnp.pad(wb, ((0, 0), (0, padded_n - N)))
    wb = jnp.pad(wb, ((0, 6), (0, 0)))                     # (8, padded_n)
    wb3 = wb.reshape(8, grid_n, tile_n).transpose(1, 0, 2)  # (grid_n, 8, tile_n)

    cost = pl.CostEstimate(
        flops=8 * N * T,
        transcendentals=N,
        bytes_accessed=2 * N * T * itemsize + 8 * N,
    )

    out2d = pl.pallas_call(
        functools.partial(_adain_kernel, eps=float(eps), inv_t=1.0 / T),
        out_shape=jax.ShapeDtypeStruct((T, N), x.dtype),
        grid=(grid_n,),
        in_specs=[
            pl.BlockSpec((T, tile_n), lambda i: (0, i)),
            # Constant index_map -> wb stays resident in VMEM for all steps.
            pl.BlockSpec((grid_n, 8, tile_n), lambda i: (0, 0, 0)),
        ],
        out_specs=pl.BlockSpec((T, tile_n), lambda i: (0, i)),
        compiler_params=pltpu.CompilerParams(
            dimension_semantics=("parallel",),
            vmem_limit_bytes=vmem_limit,
        ),
        cost_estimate=cost,
    )(x2d, wb3)

    return out2d.reshape(T, B, C)


class AdaptiveInstanceNorm1d:
    """JAX mirror of the PyTorch module (forward only)."""

    def __init__(self, num_features, eps=1e-5, momentum=0.1):
        self.num_features = num_features
        self.eps = eps
        self.momentum = momentum
        self.weight = None   # assigned externally (AdaIN style), shape (B*C,)
        self.bias = None     # assigned externally, shape (B*C,)
        self.running_mean = jnp.zeros((num_features,), jnp.float32)
        self.running_var = jnp.ones((num_features,), jnp.float32)
        # TODO(synk): running_mean/var buffer updates (training-mode side effect)
        # do not affect the forward output and are not performed here.

    def __call__(self, x, direct_weighting=False, no_std=False):
        assert self.weight is not None and self.bias is not None, \
            "Please assign AdaIN weight first"
        return adaptive_instance_norm_1d(
            x, self.weight, self.bias, eps=self.eps,
            direct_weighting=direct_weighting, no_std=no_std)


def _reference(x, weight, bias, eps=1e-5):
    # Pure-JAX reference of the default forward path (two-pass variance).
    T, B, C = x.shape
    xp = jnp.transpose(x, (1, 2, 0)).reshape(B * C, T).astype(jnp.float32)
    mean = jnp.mean(xp, axis=-1, keepdims=True)
    var = jnp.mean((xp - mean) ** 2, axis=-1, keepdims=True)
    out = ((xp - mean) / jnp.sqrt(var + eps)
           * weight.astype(jnp.float32)[:, None]
           + bias.astype(jnp.float32)[:, None])
    return jnp.transpose(out.reshape(B, C, T), (2, 0, 1)).astype(x.dtype)


if __name__ == "__main__":
    key = jax.random.PRNGKey(0)
    keys = jax.random.split(key, 12)

    # Case 1: module-sized toy shapes (seq=8, batch=2, num_features=4).
    T, B, C = 8, 2, 4
    x = jax.random.normal(keys[0], (T, B, C), dtype=jnp.float32)
    weight = jax.random.normal(keys[1], (B * C,), dtype=jnp.float32)
    bias = jax.random.normal(keys[2], (B * C,), dtype=jnp.float32)
    adain = AdaptiveInstanceNorm1d(num_features=C)
    adain.weight = weight
    adain.bias = bias
    out = jax.block_until_ready(adain(x))
    ref = _reference(x, weight, bias)
    assert out.shape == (T, B, C)
    assert jnp.allclose(out, ref, atol=2e-5, rtol=2e-5), "case 1 mismatch"

    # Case 2: multi-step pipelined grid (N=384 -> tile_n=128, 3 steps), bf16.
    T2, B2, C2 = 16, 3, 128
    x2 = jax.random.normal(keys[3], (T2, B2, C2), dtype=jnp.float32).astype(jnp.bfloat16)
    w2 = jax.random.normal(keys[4], (B2 * C2,), dtype=jnp.float32)
    b2 = jax.random.normal(keys[5], (B2 * C2,), dtype=jnp.float32)
    out2 = jax.block_until_ready(adaptive_instance_norm_1d(x2, w2, b2))
    ref2 = _reference(x2, w2, b2)
    assert out2.shape == (T2, B2, C2)
    assert jnp.allclose(out2.astype(jnp.float32), ref2.astype(jnp.float32),
                        atol=1e-1, rtol=5e-2), "case 2 mismatch"

    # Case 3: N not a multiple of 128 (N=320) -> partial last tile + padded wb.
    T3, B3, C3 = 32, 2, 160
    x3 = jax.random.normal(keys[6], (T3, B3, C3), dtype=jnp.float32)
    w3 = jax.random.normal(keys[7], (B3 * C3,), dtype=jnp.float32)
    b3 = jax.random.normal(keys[8], (B3 * C3,), dtype=jnp.float32)
    out3 = jax.block_until_ready(adaptive_instance_norm_1d(x3, w3, b3))
    ref3 = _reference(x3, w3, b3)
    assert jnp.allclose(out3, ref3, atol=2e-5, rtol=2e-5), "case 3 mismatch"

    # Case 4: force the two-pass (large-T escape hatch) path with partial
    # tiles on both axes (T=72/tile_t=16, N=288/tile_n=128).
    T4, B4, C4 = 72, 2, 144
    x4 = jax.random.normal(keys[9], (T4, B4, C4), dtype=jnp.float32)
    w4 = jax.random.normal(keys[10], (B4 * C4,), dtype=jnp.float32)
    b4 = jax.random.normal(keys[11], (B4 * C4,), dtype=jnp.float32)
    out4 = jax.block_until_ready(
        adaptive_instance_norm_1d(x4, w4, b4, force_two_pass=True,
                                  tile_t=16, tile_n=128))
    ref4 = _reference(x4, w4, b4)
    assert jnp.allclose(out4, ref4, atol=2e-5, rtol=2e-5), "case 4 mismatch"

    print("KERNEL_OK")
</pallas_src>

<mosaic_0001>
module attributes {stable_mosaic.version = 11 : i64} {
  func.func @_adain_kernel(%arg0: i32, %arg1: memref<8x8xf32, #tpu.memory_space<vmem>>, %arg2: memref<1x8x8xf32, #tpu.memory_space<vmem>>, %arg3: memref<8x8xf32, #tpu.memory_space<vmem>>) attributes {dimension_semantics = [#tpu.dimension_semantics<parallel>], iteration_bounds = array<i64: 1>, scalar_prefetch = 0 : i64, scratch_operands = 0 : i64, tpu.core_type = #tpu.core_type<tc>, window_params = [{transform_indices = @transform_0, window_bounds = array<i64: 8, 8>}, {pipeline_mode = #tpu.pipeline_mode<synchronous>, transform_indices = @transform_1, window_bounds = array<i64: 1, 8, 8>}, {transform_indices = @transform_2, window_bounds = array<i64: 8, 8>}]} {
    %0 = arith.index_cast %arg0 : i32 to index
    %c0 = arith.constant 0 : index
    %c0_0 = arith.constant 0 : index
    %1 = vector.load %arg2[%0, %c0, %c0_0] : memref<1x8x8xf32, #tpu.memory_space<vmem>>, vector<1x8x8xf32>
    %2 = vector.shape_cast %1 : vector<1x8x8xf32> to vector<8x8xf32>
    %3 = vector.extract_strided_slice %2 {offsets = [0, 0], sizes = [1, 8], strides = [1, 1]} : vector<8x8xf32> to vector<1x8xf32>
    %4 = vector.extract_strided_slice %2 {offsets = [1, 0], sizes = [1, 8], strides = [1, 1]} : vector<8x8xf32> to vector<1x8xf32>
    %c0_1 = arith.constant 0 : index
    %c0_2 = arith.constant 0 : index
    %5 = vector.load %arg1[%c0_1, %c0_2] : memref<8x8xf32, #tpu.memory_space<vmem>>, vector<8x8xf32>
    %6 = vector.extract_strided_slice %5 {offsets = [0, 0], sizes = [1, 8], strides = [1, 1]} : vector<8x8xf32> to vector<1x8xf32>
    %7 = vector.broadcast %6 : vector<1x8xf32> to vector<8x8xf32>
    %8 = arith.subf %5, %7 : vector<8x8xf32>
    %cst = arith.constant dense<0.000000e+00> : vector<8xf32>
    %9 = vector.multi_reduction <add>, %8, %cst [0] : vector<8x8xf32> to vector<8xf32>
    %10 = vector.shape_cast %9 : vector<8xf32> to vector<1x8xf32>
    %11 = arith.mulf %8, %8 : vector<8x8xf32>
    %cst_3 = arith.constant dense<0.000000e+00> : vector<8xf32>
    %12 = vector.multi_reduction <add>, %11, %cst_3 [0] : vector<8x8xf32> to vector<8xf32>
    %13 = vector.shape_cast %12 : vector<8xf32> to vector<1x8xf32>
    %cst_4 = arith.constant 1.250000e-01 : f32
    %14 = vector.broadcast %cst_4 : f32 to vector<1x8xf32>
    %15 = arith.mulf %10, %14 : vector<1x8xf32>
    %cst_5 = arith.constant 1.250000e-01 : f32
    %16 = vector.broadcast %cst_5 : f32 to vector<1x8xf32>
    %17 = arith.mulf %13, %16 : vector<1x8xf32>
    %18 = arith.mulf %15, %15 : vector<1x8xf32>
    %19 = arith.subf %17, %18 : vector<1x8xf32>
    %cst_6 = arith.constant 0.000000e+00 : f32
    %20 = vector.broadcast %cst_6 : f32 to vector<1x8xf32>
    %21 = arith.maximumf %19, %20 : vector<1x8xf32>
    %cst_7 = arith.constant 9.99999974E-6 : f32
    %22 = vector.broadcast %cst_7 : f32 to vector<1x8xf32>
    %23 = arith.addf %21, %22 : vector<1x8xf32>
    %24 = math.rsqrt %23 : vector<1x8xf32>
    %25 = arith.mulf %24, %3 : vector<1x8xf32>
    %26 = arith.mulf %15, %25 : vector<1x8xf32>
    %27 = arith.subf %4, %26 : vector<1x8xf32>
    %28 = vector.broadcast %25 : vector<1x8xf32> to vector<8x8xf32>
    %29 = arith.mulf %8, %28 : vector<8x8xf32>
    %30 = vector.broadcast %27 : vector<1x8xf32> to vector<8x8xf32>
    %31 = arith.addf %29, %30 : vector<8x8xf32>
    %c0_8 = arith.constant 0 : index
    %c0_9 = arith.constant 0 : index
    %32 = vector.load %arg3[%c0_8, %c0_9] : memref<8x8xf32, #tpu.memory_space<vmem>>, vector<8x8xf32>
    tpu.vector_store %arg3[%c0_8, %c0_9], %31 {strides = array<i32>} : memref<8x8xf32, #tpu.memory_space<vmem>>, vector<8x8xf32>,
    return
  }
  func.func @transform_0(%arg0: i32) -> (i32, i32) {
    %c0_i32 = arith.constant 0 : i32
    %c0_i32_0 = arith.constant 0 : i32
    return %c0_i32, %arg0 : i32, i32
  }
  func.func @transform_1(%arg0: i32) -> (i32, i32, i32) {
    %c0_i32 = arith.constant 0 : i32
    %c0_i32_0 = arith.constant 0 : i32
    %c0_i32_1 = arith.constant 0 : i32
    %c0_i32_2 = arith.constant 0 : i32
    return %c0_i32, %c0_i32_0, %c0_i32_1 : i32, i32, i32
  }
  func.func @transform_2(%arg0: i32) -> (i32, i32) {
    %c0_i32 = arith.constant 0 : i32
    %c0_i32_0 = arith.constant 0 : i32
    return %c0_i32, %arg0 : i32, i32
  }
}

</mosaic_0001>

<llo_original>
// kernel: tpu_custom_call.1
$region0: #{tpu_custom_call.1}
  #allocation0 [shape = 'u32[]', space=smem, size = 0x4, offset = 0x4, fixed_abs, tag = 'smem constant byte address 0x4 - core index']
  #allocation1 [shape = 'u32[72,128]{1,0:T(1,128)}', space=vmem, size = 0x9000, scoped, tag = 'internal scratch']
  %s0 = inlined_call_operand.hbm [shape: f32[8,8], index: 0, kind: input, shape index: {}]
  %s1 = inlined_call_operand.hbm [shape: f32[1,8,8], index: 1, kind: input, shape index: {}]
  %s2 = inlined_call_operand.hbm [shape: f32[8,8], index: 2, kind: output, shape index: {}]
  %s3 = sld [smem:[#allocation0]]
  $region26: #{tpu_custom_call.1} parent=0
    _
  %s5 = ssub.s32 1, %s3
  %s6 = scalar_select 0, %s5, %s3
  $region1: #{tpu_custom_call.1} parent=0
    #allocation2 [shape = 'u8[4096]{0}', space=vmem, size = 0x1000, scoped, tag = 'input window, operand 0, single buffered']
    #allocation3 [shape = 's32[1]{0}', space=sflag, size = 0x4, scoped, tag = 'scoped memory for tpu_custom_call.1']
    #allocation4 [shape = 's32[1]{0}', space=sflag, size = 0x4, scoped, tag = 'scoped memory for tpu_custom_call.1']
    #allocation5 [shape = 'u8[4096]{0}', space=vmem, size = 0x1000, scoped, tag = 'input window, operand 1, single buffered']
    #allocation6 [shape = 's32[1]{0}', space=sflag, size = 0x4, scoped, tag = 'scoped memory for tpu_custom_call.1']
    #allocation7 [shape = 'u8[4096]{0}', space=vmem, size = 0x1000, scoped, tag = 'output window, operand 0, single buffered']
    %7 = vsyncpa [#allocation3], 0
    %8 = vsyncpa [#allocation6], 0
    %9 = vsyncpa [#allocation4], 0
    // Predicated region
    $region2: #{tpu_custom_call.1} parent=1 // pred_check
      _
    $region3: #{tpu_custom_call.1} parent=1 // pred_check_branch
      %11 = sbr.rel (0) target = $region5
    $region4: #{tpu_custom_call.1} parent=1 // pred_region
      %13 = vsyncadd [#allocation3], 0
      %s15 = sshll.u32 %s0, 4
      %s16 = int_to_ptr.hbm [resolvable:$true] %s15
      %s17 = sshll.u32 [#allocation2], 4
      %s18 = int_to_ptr.vmem [resolvable:$true] %s17
      %20 = dma.hbm_to_vmem [thread:$0]  %s16, 128, %s18, [#allocation3]
    $region5: #{tpu_custom_call.1} parent=1 // pred_fallthru
      _
    // Predicated region
    $region6: #{tpu_custom_call.1} parent=1 // pred_check
      _
    $region7: #{tpu_custom_call.1} parent=1 // pred_check_branch
      %22 = sbr.rel (0) target = $region9
    $region8: #{tpu_custom_call.1} parent=1 // pred_region
      %24 = vsyncadd [#allocation6], 0
      %s26 = sshll.u32 %s1, 4
      %s27 = int_to_ptr.hbm [resolvable:$true] %s26
      %s28 = sshll.u32 [#allocation5], 4
      %s29 = int_to_ptr.vmem [resolvable:$true] %s28
      %31 = dma.hbm_to_vmem [thread:$0]  %s27, 128, %s29, [#allocation6]
    $region9: #{tpu_custom_call.1} parent=1 // pred_fallthru
      _
    // Predicated region
    $region10: #{tpu_custom_call.1} parent=1 // pred_check
      _
    $region11: #{tpu_custom_call.1} parent=1 // pred_check_branch
      %33 = sbr.rel (0) target = $region13
    $region12: #{tpu_custom_call.1} parent=1 // pred_region
      %35 = dma.done [#allocation3], 128
    $region13: #{tpu_custom_call.1} parent=1 // pred_fallthru
      _
    // Predicated region
    $region14: #{tpu_custom_call.1} parent=1 // pred_check
      _
    $region15: #{tpu_custom_call.1} parent=1 // pred_check_branch
      %37 = sbr.rel (0) target = $region17
    $region16: #{tpu_custom_call.1} parent=1 // pred_region
      %39 = dma.done [#allocation6], 128
    $region17: #{tpu_custom_call.1} parent=1 // pred_fallthru
      _
    %s40 = smul.u32 0, 8
    %s41 = scalar_lea.vmem [#allocation5], %s40
    %v42 = vld [vmem:[%s41] sm:$0xff]
    %v43 = vld [vmem:[#allocation2] sm:$0xff]
    %v44 = vperm.slane %v43, 0
    %v45 = vsub.f32 %v43, %v44
    %vm46 = vcmask 64512
    %v47 = vsel %vm46, %v45, 0.0
    %v48 = vrot.slane %v47, 4
    %v49 = vadd.f32 %v47, %v48
    %v50 = vrot.slane %v49, 2
    %v51 = vadd.f32 %v49, %v50
    %v52 = vrot.slane %v51, 1
    %v53 = vadd.f32 %v51, %v52
    %v54 = vmul.f32 %v45, %v45
    %v55 = vsel %vm46, %v54, 0.0
    %v56 = vrot.slane %v55, 4
    %v57 = vadd.f32 %v55, %v56
    %v58 = vrot.slane %v57, 2
    %v59 = vadd.f32 %v57, %v58
    %v60 = vrot.slane %v59, 1
    %v61 = vadd.f32 %v59, %v60
    %v62 = vmul.f32 %v53, 0.125
    %v63 = vmul.f32 %v61, 0.125
    %v64 = vmul.f32 %v62, %v62
    %v65 = vsub.f32 %v63, %v64
    %v66 = vmax.f32 %v65, 0.0
    %v67 = vadd.f32 %v66, 1e-05
    %v68 = vrsqrt.pop %v67
    %v69 = vmul.f32 %v68, %v67
    %v70 = vmul.f32 %v69, %v68
    %v71 = vmul.f32 0.5, %v70
    %v72 = vsub.f32 1.5, %v71
    %v73 = vmul.f32 %v68, %v72
    %vm74 = vweird.f32 %v67
    %vm75 = vweird.f32 %v68
    %vm76 = vmor %vm74, %vm75
    %v77 = vsel %vm76, %v68, %v73
    %v78 = vmul.f32 %v77, %v42
    %v79 = vmul.f32 %v62, %v78
    %v81 = vrot.slane %v79, 7
    %v83 = vsub.f32 %v42, %v81
    %v84 = vperm.slane %v78, 0
    %v85 = vmul.f32 %v45, %v84
    %v86 = vperm.slane %v83, 1
    %v87 = vadd.f32 %v85, %v86
    %88 = vst.msk [vmem:[#allocation7] sm:$0xff] %vm46, %v87
    // Predicated region
    $region18: #{tpu_custom_call.1} parent=1 // pred_check
      _
    $region19: #{tpu_custom_call.1} parent=1 // pred_check_branch
      %90 = sbr.rel (0) target = $region21
    $region20: #{tpu_custom_call.1} parent=1 // pred_region
      %92 = vsyncadd [#allocation4], 0
      %s94 = sshll.u32 [#allocation7], 4
      %s95 = int_to_ptr.vmem [resolvable:$true] %s94
      %s96 = sshll.u32 %s2, 4
      %s97 = int_to_ptr.hbm [resolvable:$true] %s96
      %99 = dma.vmem_to_hbm [thread:$0]  %s95, 128, %s97, [#allocation4]
    $region21: #{tpu_custom_call.1} parent=1 // pred_fallthru
      _
    // Predicated region
    $region22: #{tpu_custom_call.1} parent=1 // pred_check
      _
    $region23: #{tpu_custom_call.1} parent=1 // pred_check_branch
      %101 = sbr.rel (0) target = $region25
    $region24: #{tpu_custom_call.1} parent=1 // pred_region
      %103 = dma.done [#allocation4], 128
    $region25: #{tpu_custom_call.1} parent=1 // pred_fallthru
      _
    %104 = vsyncpa [#allocation3], 1
    %105 = vsyncpa [#allocation6], 1
    %106 = vsyncpa [#allocation4], 1

</llo_original>
